<compile_context>
chip_gen: v5e
topology: v5e:2x2
jax: 0.10.0
libtpu: 0.0.40
codegen_flags: <defaults>
</compile_context>

<pallas_src>
import jax
import jax.numpy as jnp
from jax.experimental import pallas as pl
from jax.experimental.pallas import tpu as pltpu


def _round_up(x, m):
    return ((x + m - 1) // m) * m


def pallas_loss(src_down1, src_down2, dst, down1_dst, down2_dst):
    N, C, H, W = dst.shape
    assert H % 2 == 0 and W % 2 == 0, "pair-downsampler requires even H, W"
    h, w = H // 2, W // 2
    for x in (src_down1, src_down2, down1_dst, down2_dst):
        assert x.shape == (N, C, h, w)

    # downsample(dst): stride-2 de-interleave + average of the two diagonals.
    # TODO(synk): the even/odd lane de-interleave itself stays in XLA; Mosaic
    # has no documented-safe lane-strided slice to do it inside the kernel.
    # allow_input_fusion (below) lets XLA fuse this producer into the
    # pallas_call operands so dst_d1/dst_d2 are never written back to HBM.
    a = dst[:, :, 0::2, 0::2]
    b = dst[:, :, 0::2, 1::2]
    c = dst[:, :, 1::2, 0::2]
    d = dst[:, :, 1::2, 1::2]
    dst_d1 = (b + c) * 0.5
    dst_d2 = (a + d) * 0.5

    # ---- lane-dense flatten (exact reshape, never padded) -------------------
    T = N * C * h * w
    lane = None
    for L in (512, 256, 128):
        if T % L == 0:
            lane = L
            break
    if lane is not None:
        R = T // lane                 # full 128-lane vregs, no lane padding
    else:
        lane = w                      # fallback: (N*C*h, w) contiguous planes
        R = N * C * h
    view = (R, lane)

    ops = [x.reshape(view) for x in
           (src_down1, src_down2, down1_dst, down2_dst, dst_d1, dst_d2)]

    # ---- block sizing (budgeted against padded-in-VMEM width) ---------------
    itemsize = jnp.dtype(dst.dtype).itemsize
    padded_lane = _round_up(lane, 128)
    bytes_per_row_vmem = padded_lane * itemsize
    TARGET_BLOCK_BYTES = 2 << 20      # ~2 MiB/plane -> 6 planes x 2 bufs ~ 24 MiB
    target_rows = max(8, (TARGET_BLOCK_BYTES // bytes_per_row_vmem) // 8 * 8)

    if R <= 8:
        rows = R                      # single full-extent block (tiny inputs)
    else:
        # never collapse to one grid step: keep >= 2 so v7x uses both TCs
        half = _round_up(-(-R // 2), 8)
        rows = max(8, min(target_rows, half))
    grid = -(-R // rows)
    need_mask = (R % rows) != 0

    def kernel(s1_ref, s2_ref, d1_ref, d2_ref, t1_ref, t2_ref, out_ref):
        f32 = jnp.float32
        # Note: compute in f32 regardless of input dtype (intentional; for
        # bf16/fp16 inputs this is slightly more accurate than strict PyTorch
        # in-dtype semantics).
        s1 = s1_ref[...].astype(f32)
        s2 = s2_ref[...].astype(f32)
        d1 = d1_ref[...].astype(f32)
        d2 = d2_ref[...].astype(f32)
        t1 = t1_ref[...].astype(f32)
        t2 = t2_ref[...].astype(f32)

        loss_res = 0.5 * ((d1 - s2) ** 2 + (d2 - s1) ** 2)
        loss_cons = 0.5 * ((d1 - t1) ** 2 + (d2 - t2) ** 2)
        total = loss_res + loss_cons

        if need_mask:
            # Only the final block is ragged; rows are always full (the
            # lane-dense reshape is exact, never padded), so a per-row mask
            # is sufficient.  VPU has large slack under the DMAs.
            row = jax.lax.broadcasted_iota(jnp.int32, total.shape, 0)
            valid = (pl.program_id(0) * rows + row) < R
            total = jnp.where(valid, total, 0.0)

        partial = jnp.sum(total)
        # Fully (8,128)-aligned per-step output block -> unmasked vst + tiny DMA.
        out_ref[...] = jnp.broadcast_to(partial, out_ref.shape).astype(f32)

    in_spec = pl.BlockSpec((rows, lane), lambda i: (i, 0))
    out_spec = pl.BlockSpec((1, 8, 128), lambda i: (i, 0, 0))

    partials = pl.pallas_call(
        kernel,
        out_shape=jax.ShapeDtypeStruct((grid, 8, 128), jnp.float32),
        grid_spec=pltpu.PrefetchScalarGridSpec(
            num_scalar_prefetch=0,
            grid=(grid,),
            in_specs=[in_spec] * 6,
            out_specs=out_spec,
        ),
        compiler_params=pltpu.CompilerParams(
            dimension_semantics=("parallel",),
            vmem_limit_bytes=40 << 20,
            allow_input_fusion=[False, False, False, False, True, True],
        ),
    )(*ops)

    # .mean() over the (N, C, h, w) loss tensor.
    return jnp.sum(partials[:, 0, 0]) / T


def _reference_loss(src_down1, src_down2, dst, down1_dst, down2_dst):
    a = dst[:, :, 0::2, 0::2]
    b = dst[:, :, 0::2, 1::2]
    c = dst[:, :, 1::2, 0::2]
    d = dst[:, :, 1::2, 1::2]
    dst_down1 = 0.5 * (b + c)
    dst_down2 = 0.5 * (a + d)
    loss_res = 0.5 * ((down1_dst - src_down2) ** 2 + (down2_dst - src_down1) ** 2)
    loss_cons = 0.5 * ((down1_dst - dst_down1) ** 2 + (down2_dst - dst_down2) ** 2)
    return (loss_res + loss_cons).mean()


def _run_case(key, N, C, H, W):
    h, w = H // 2, W // 2
    k1, k2, k3, k4, k5 = jax.random.split(key, 5)
    src_down1 = jax.random.normal(k1, (N, C, h, w), dtype=jnp.float32)
    src_down2 = jax.random.normal(k2, (N, C, h, w), dtype=jnp.float32)
    dst       = jax.random.normal(k3, (N, C, H, W), dtype=jnp.float32)
    down1_dst = jax.random.normal(k4, (N, C, h, w), dtype=jnp.float32)
    down2_dst = jax.random.normal(k5, (N, C, h, w), dtype=jnp.float32)

    out = jax.jit(pallas_loss)(src_down1, src_down2, dst, down1_dst, down2_dst)
    out = jax.block_until_ready(out)
    ref = _reference_loss(src_down1, src_down2, dst, down1_dst, down2_dst)
    assert jnp.allclose(out, ref, rtol=1e-5, atol=1e-5), (out, ref)


if __name__ == "__main__":
    key = jax.random.PRNGKey(0)
    k_a, k_b = jax.random.split(key)
    _run_case(k_a, N=2, C=4, H=16, W=16)     # lane-dense path (T % 512 == 0)
    _run_case(k_b, N=1, C=3, H=20, W=24)     # ragged fallback path, grid=2
    print("KERNEL_OK")
</pallas_src>

<mosaic_0001>
module attributes {stable_mosaic.version = 11 : i64} {
  func.func @kernel(%arg0: i32, %arg1: memref<1x512xf32, #tpu.memory_space<vmem>>, %arg2: memref<1x512xf32, #tpu.memory_space<vmem>>, %arg3: memref<1x512xf32, #tpu.memory_space<vmem>>, %arg4: memref<1x512xf32, #tpu.memory_space<vmem>>, %arg5: memref<1x512xf32, #tpu.memory_space<vmem>>, %arg6: memref<1x512xf32, #tpu.memory_space<vmem>>, %arg7: memref<1x8x128xf32, #tpu.memory_space<vmem>>) attributes {dimension_semantics = [#tpu.dimension_semantics<parallel>], iteration_bounds = array<i64: 1>, scalar_prefetch = 0 : i64, scratch_operands = 0 : i64, tpu.core_type = #tpu.core_type<tc>, window_params = [{transform_indices = @transform_0, window_bounds = array<i64: 1, 512>}, {transform_indices = @transform_1, window_bounds = array<i64: 1, 512>}, {transform_indices = @transform_2, window_bounds = array<i64: 1, 512>}, {transform_indices = @transform_3, window_bounds = array<i64: 1, 512>}, {transform_indices = @transform_4, window_bounds = array<i64: 1, 512>}, {transform_indices = @transform_5, window_bounds = array<i64: 1, 512>}, {transform_indices = @transform_6, window_bounds = array<i64: 1, 8, 128>}]} {
    %c0 = arith.constant 0 : index
    %c0_0 = arith.constant 0 : index
    %0 = vector.load %arg1[%c0, %c0_0] : memref<1x512xf32, #tpu.memory_space<vmem>>, vector<1x512xf32>
    %c0_1 = arith.constant 0 : index
    %c0_2 = arith.constant 0 : index
    %1 = vector.load %arg2[%c0_1, %c0_2] : memref<1x512xf32, #tpu.memory_space<vmem>>, vector<1x512xf32>
    %c0_3 = arith.constant 0 : index
    %c0_4 = arith.constant 0 : index
    %2 = vector.load %arg3[%c0_3, %c0_4] : memref<1x512xf32, #tpu.memory_space<vmem>>, vector<1x512xf32>
    %c0_5 = arith.constant 0 : index
    %c0_6 = arith.constant 0 : index
    %3 = vector.load %arg4[%c0_5, %c0_6] : memref<1x512xf32, #tpu.memory_space<vmem>>, vector<1x512xf32>
    %c0_7 = arith.constant 0 : index
    %c0_8 = arith.constant 0 : index
    %4 = vector.load %arg5[%c0_7, %c0_8] : memref<1x512xf32, #tpu.memory_space<vmem>>, vector<1x512xf32>
    %c0_9 = arith.constant 0 : index
    %c0_10 = arith.constant 0 : index
    %5 = vector.load %arg6[%c0_9, %c0_10] : memref<1x512xf32, #tpu.memory_space<vmem>>, vector<1x512xf32>
    %6 = arith.subf %2, %1 : vector<1x512xf32>
    %7 = arith.mulf %6, %6 : vector<1x512xf32>
    %8 = arith.subf %3, %0 : vector<1x512xf32>
    %9 = arith.mulf %8, %8 : vector<1x512xf32>
    %10 = arith.addf %7, %9 : vector<1x512xf32>
    %cst = arith.constant 5.000000e-01 : f32
    %11 = vector.broadcast %cst : f32 to vector<1x512xf32>
    %12 = arith.mulf %11, %10 : vector<1x512xf32>
    %13 = arith.subf %2, %4 : vector<1x512xf32>
    %14 = arith.mulf %13, %13 : vector<1x512xf32>
    %15 = arith.subf %3, %5 : vector<1x512xf32>
    %16 = arith.mulf %15, %15 : vector<1x512xf32>
    %17 = arith.addf %14, %16 : vector<1x512xf32>
    %cst_11 = arith.constant 5.000000e-01 : f32
    %18 = vector.broadcast %cst_11 : f32 to vector<1x512xf32>
    %19 = arith.mulf %18, %17 : vector<1x512xf32>
    %20 = arith.addf %12, %19 : vector<1x512xf32>
    %21 = vector.shape_cast %20 : vector<1x512xf32> to vector<1x1x512xf32>
    %cst_12 = arith.constant dense<0.000000e+00> : vector<1xf32>
    %22 = vector.multi_reduction <add>, %21, %cst_12 [1, 2] : vector<1x1x512xf32> to vector<1xf32>
    %23 = vector.shape_cast %22 : vector<1xf32> to vector<1x1x1xf32>
    %24 = vector.extract %23[0, 0, 0] : f32 from vector<1x1x1xf32>
    %25 = vector.broadcast %24 : f32 to vector<1x8x128xf32>
    %c0_13 = arith.constant 0 : index
    %c0_14 = arith.constant 0 : index
    %c0_15 = arith.constant 0 : index
    %26 = vector.load %arg7[%c0_13, %c0_14, %c0_15] : memref<1x8x128xf32, #tpu.memory_space<vmem>>, vector<1x8x128xf32>
    tpu.vector_store %arg7[%c0_13, %c0_14, %c0_15], %25 {strides = array<i32>} : memref<1x8x128xf32, #tpu.memory_space<vmem>>, vector<1x8x128xf32>,
    return
  }
  func.func @transform_0(%arg0: i32) -> (i32, i32) {
    %c0_i32 = arith.constant 0 : i32
    %c0_i32_0 = arith.constant 0 : i32
    return %arg0, %c0_i32 : i32, i32
  }
  func.func @transform_1(%arg0: i32) -> (i32, i32) {
    %c0_i32 = arith.constant 0 : i32
    %c0_i32_0 = arith.constant 0 : i32
    return %arg0, %c0_i32 : i32, i32
  }
  func.func @transform_2(%arg0: i32) -> (i32, i32) {
    %c0_i32 = arith.constant 0 : i32
    %c0_i32_0 = arith.constant 0 : i32
    return %arg0, %c0_i32 : i32, i32
  }
  func.func @transform_3(%arg0: i32) -> (i32, i32) {
    %c0_i32 = arith.constant 0 : i32
    %c0_i32_0 = arith.constant 0 : i32
    return %arg0, %c0_i32 : i32, i32
  }
  func.func @transform_4(%arg0: i32) -> (i32, i32) {
    %c0_i32 = arith.constant 0 : i32
    %c0_i32_0 = arith.constant 0 : i32
    return %arg0, %c0_i32 : i32, i32
  }
  func.func @transform_5(%arg0: i32) -> (i32, i32) {
    %c0_i32 = arith.constant 0 : i32
    %c0_i32_0 = arith.constant 0 : i32
    return %arg0, %c0_i32 : i32, i32
  }
  func.func @transform_6(%arg0: i32) -> (i32, i32, i32) {
    %c0_i32 = arith.constant 0 : i32
    %c0_i32_0 = arith.constant 0 : i32
    %c0_i32_1 = arith.constant 0 : i32
    return %arg0, %c0_i32, %c0_i32_0 : i32, i32, i32
  }
}

</mosaic_0001>

<llo_original>
// kernel: pallas_loss.1
$region0: #{pallas_loss.1}
  #allocation0 [shape = 'u32[]', space=smem, size = 0x4, offset = 0x4, fixed_abs, tag = 'smem constant byte address 0x4 - core index']
  #allocation1 [shape = 'u32[72,128]{1,0:T(1,128)}', space=vmem, size = 0x9000, scoped, tag = 'internal scratch']
  %s0 = inlined_call_operand.vmem [shape: f32[1,512], index: 0, kind: input, shape index: {}]
  %s1 = inlined_call_operand.vmem [shape: f32[1,512], index: 1, kind: input, shape index: {}]
  %s2 = inlined_call_operand.vmem [shape: f32[1,512], index: 2, kind: input, shape index: {}]
  %s3 = inlined_call_operand.vmem [shape: f32[1,512], index: 3, kind: input, shape index: {}]
  %s4 = inlined_call_operand.vmem [shape: f32[1,512], index: 4, kind: input, shape index: {}]
  %s5 = inlined_call_operand.vmem [shape: f32[1,512], index: 5, kind: input, shape index: {}]
  %s6 = inlined_call_operand.vmem [shape: f32[1,8,128], index: 6, kind: output, shape index: {}]
  %s7 = sld [smem:[#allocation0]]
  $region34: #{pallas_loss.1} parent=0
    _
  %s9 = ssub.s32 1, %s7
  %s10 = scalar_select 0, %s9, %s7
  // Predicated region
  $region2: #{pallas_loss.1} parent=0 // pred_check
    _
  $region3: #{pallas_loss.1} parent=0 // pred_check_branch
    %12 = sbr.rel (0) target = $region5
  $region4: #{pallas_loss.1} parent=0 // pred_region
    _
  $region5: #{pallas_loss.1} parent=0 // pred_fallthru
    _
  // Predicated region
  $region6: #{pallas_loss.1} parent=0 // pred_check
    _
  $region7: #{pallas_loss.1} parent=0 // pred_check_branch
    %14 = sbr.rel (0) target = $region9
  $region8: #{pallas_loss.1} parent=0 // pred_region
    _
  $region9: #{pallas_loss.1} parent=0 // pred_fallthru
    _
  // Predicated region
  $region10: #{pallas_loss.1} parent=0 // pred_check
    _
  $region11: #{pallas_loss.1} parent=0 // pred_check_branch
    %16 = sbr.rel (0) target = $region13
  $region12: #{pallas_loss.1} parent=0 // pred_region
    _
  $region13: #{pallas_loss.1} parent=0 // pred_fallthru
    _
  // Predicated region
  $region14: #{pallas_loss.1} parent=0 // pred_check
    _
  $region15: #{pallas_loss.1} parent=0 // pred_check_branch
    %18 = sbr.rel (0) target = $region17
  $region16: #{pallas_loss.1} parent=0 // pred_region
    _
  $region17: #{pallas_loss.1} parent=0 // pred_fallthru
    _
  // Predicated region
  $region18: #{pallas_loss.1} parent=0 // pred_check
    _
  $region19: #{pallas_loss.1} parent=0 // pred_check_branch
    %20 = sbr.rel (0) target = $region21
  $region20: #{pallas_loss.1} parent=0 // pred_region
    _
  $region21: #{pallas_loss.1} parent=0 // pred_fallthru
    _
  // Predicated region
  $region22: #{pallas_loss.1} parent=0 // pred_check
    _
  $region23: #{pallas_loss.1} parent=0 // pred_check_branch
    %22 = sbr.rel (0) target = $region25
  $region24: #{pallas_loss.1} parent=0 // pred_region
    _
  $region25: #{pallas_loss.1} parent=0 // pred_fallthru
    _
  %v23 = vld [vmem:[%s0] sm:$0xf]
  %v24 = vld [vmem:[%s1] sm:$0xf]
  %v25 = vld [vmem:[%s2] sm:$0xf]
  %v26 = vld [vmem:[%s3] sm:$0xf]
  %v27 = vld [vmem:[%s4] sm:$0xf]
  %v28 = vld [vmem:[%s5] sm:$0xf]
  %v29 = vsub.f32 %v25, %v24
  %v30 = vmul.f32 %v29, %v29
  %v31 = vsub.f32 %v26, %v23
  %v32 = vmul.f32 %v31, %v31
  %v33 = vadd.f32 %v30, %v32
  %v34 = vmul.f32 %v33, 0.5
  %v35 = vsub.f32 %v25, %v27
  %v36 = vmul.f32 %v35, %v35
  %v37 = vsub.f32 %v26, %v28
  %v38 = vmul.f32 %v37, %v37
  %v39 = vadd.f32 %v36, %v38
  %v40 = vmul.f32 %v39, 0.5
  %v41 = vadd.f32 %v34, %v40
  %v43 = vperm.slane %v41, 0
  %v44 = vperm.slane %v41, 1
  %v45 = vperm.slane %v41, 2
  %v46 = vperm.slane %v41, 3
  %vm51 = vcmask 1040384
  %v52 = vsel %vm51, %v43, 0.0
  %v53 = vsel %vm51, %v44, 0.0
  %v54 = vadd.f32 %v52, %v53
  %v55 = vsel %vm51, %v45, 0.0
  %v56 = vadd.f32 %v54, %v55
  %v57 = vsel %vm51, %v46, 0.0
  %v58 = vadd.f32 %v56, %v57
  %59 = vadd.xlane.f32.xlu0 %v58
  %v60 = vpop.xlane.xlu0 %59
  %v61 = vrot.slane %v60, 4
  %v62 = vadd.f32 %v60, %v61
  %v63 = vrot.slane %v62, 2
  %v64 = vadd.f32 %v62, %v63
  %v65 = vrot.slane %v64, 1
  %v66 = vadd.f32 %v64, %v65
  %s67 = vtos %v66
  %v68 = vstv %s67
  %69 = vst [vmem:[%s6] sm:$0xff] %v68
  // Predicated region
  $region26: #{pallas_loss.1} parent=0 // pred_check
    _
  $region27: #{pallas_loss.1} parent=0 // pred_check_branch
    %71 = sbr.rel (0) target = $region29
  $region28: #{pallas_loss.1} parent=0 // pred_region
    _
  $region29: #{pallas_loss.1} parent=0 // pred_fallthru
    _
  // Predicated region
  $region30: #{pallas_loss.1} parent=0 // pred_check
    _
  $region31: #{pallas_loss.1} parent=0 // pred_check_branch
    %73 = sbr.rel (0) target = $region33
  $region32: #{pallas_loss.1} parent=0 // pred_region
    _
  $region33: #{pallas_loss.1} parent=0 // pred_fallthru
    _

</llo_original>
